<compile_context>
chip_gen: v5e
topology: v5e:2x2
jax: 0.10.0
libtpu: 0.0.40
codegen_flags: <defaults>
</compile_context>

<pallas_src>
import functools

import jax
import jax.numpy as jnp
from jax import lax
from jax.experimental import pallas as pl
from jax.experimental.pallas import tpu as pltpu


LANE_W = 1024                  # preferred lane width for the free 2-D view
SUBLANE = 8                    # f32 sublanes per vreg
MAX_BLOCK_ROWS = 2048          # rows per pipelined block (8 MiB f32 / 4 MiB bf16 @ 1024 lanes)
TARGET_BLOCK_BYTES = 8 << 20   # aim for ~8 MiB input blocks
CHUNK_ROWS = 32                # rows folded into the accumulator per fori_loop step
VMEM_LIMIT_BYTES = 48 << 20    # 2 x 8 MiB double-buffered input + scratch, with headroom
# Below this many elements a plain jnp reduction beats launch overhead.  (A production
# value would be ~one block, ~2M elements; kept small here so the demo below actually
# exercises the kernel path at small shapes.)
MIN_KERNEL_ELEMS = 8 * LANE_W


def _cdiv(a: int, b: int) -> int:
    return -(-a // b)


def _packed_sublane(dtype) -> int:
    """Sublane multiple of one packed vreg tile for this dtype (8 f32 / 16 bf16 / 32 int8)."""
    return SUBLANE * max(1, 4 // jnp.dtype(dtype).itemsize)


def _abs_sum_kernel(x_ref, o_ref, acc_ref, *, rows, block_rows, cols, chunk_rows, need_mask):
    """Accumulate sum(|x|) over the reduction grid axis (axis 1).

    x_ref  : (block_rows, cols) input tile, native dtype
    o_ref  : (1, SUBLANE, 128) f32 per-part partial sum (scalar broadcast to the block)
    acc_ref: (SUBLANE, cols)   f32 accumulator, resident across the reduction axis
    """
    p = pl.program_id(0)
    k = pl.program_id(1)
    nk = pl.num_programs(1)

    @pl.when(k == 0)
    def _init():
        acc_ref[...] = jnp.zeros_like(acc_ref)

    block_row0 = (p * nk + k) * block_rows        # first global row of this block
    nchunks = block_rows // chunk_rows

    def body(i, acc):
        r0 = pl.multiple_of(i * chunk_rows, chunk_rows)
        ax = jnp.abs(x_ref[pl.ds(r0, chunk_rows), :]).astype(jnp.float32)
        if need_mask:  # boundary block: zero rows past the end of the array (OOB reads are garbage)
            row_ids = lax.broadcasted_iota(jnp.int32, (chunk_rows, cols), 0)
            ax = jnp.where(row_ids + (block_row0 + r0) < rows, ax, 0.0)
        # Fold sublane groups with pure VALU adds (no XLU, no per-chunk VMEM stores).
        return acc + ax.reshape(chunk_rows // SUBLANE, SUBLANE, cols).sum(axis=0)

    acc_ref[...] = lax.fori_loop(0, nchunks, body, acc_ref[...])

    @pl.when(k == nk - 1)
    def _finalize():
        total = jnp.sum(acc_ref[...])             # single cross-lane (XLU) reduce per part
        o_ref[...] = jnp.full(o_ref.shape, total, o_ref.dtype)


def _l1_abs_sum_2d(x: jax.Array, *, block_rows: int, num_cores: int = 1) -> jax.Array:
    """sum(|x|) in f32 over a 2-D array, tiled over rows with full-width columns."""
    rows, cols = x.shape
    s = _packed_sublane(x.dtype)
    assert block_rows >= s and block_rows % s == 0 and block_rows <= max(rows, s)

    nblocks = _cdiv(rows, block_rows)
    nparts = 1
    if num_cores > 1 and nblocks % num_cores == 0 and nblocks >= 2 * num_cores:
        nparts = num_cores
    nblocks_per_part = nblocks // nparts
    need_mask = (rows % block_rows) != 0
    chunk_rows = CHUNK_ROWS if block_rows % CHUNK_ROWS == 0 else s

    kernel = functools.partial(
        _abs_sum_kernel, rows=rows, block_rows=block_rows, cols=cols,
        chunk_rows=chunk_rows, need_mask=need_mask)

    if nparts > 1:
        # v7x: split independent partial sums across the two TensorCores.
        dim_sem = (pltpu.CORE_PARALLEL, pltpu.ARBITRARY)
    else:
        dim_sem = ("arbitrary", "arbitrary")

    out = pl.pallas_call(
        kernel,
        out_shape=jax.ShapeDtypeStruct((nparts, SUBLANE, 128), jnp.float32),
        grid_spec=pltpu.PrefetchScalarGridSpec(
            num_scalar_prefetch=0,
            grid=(nparts, nblocks_per_part),
            in_specs=[
                pl.BlockSpec((block_rows, cols),
                             lambda p, k: (p * nblocks_per_part + k, 0)),
            ],
            out_specs=pl.BlockSpec((1, SUBLANE, 128), lambda p, k: (p, 0, 0)),
            scratch_shapes=[pltpu.VMEM((SUBLANE, cols), jnp.float32)],
        ),
        compiler_params=pltpu.CompilerParams(
            dimension_semantics=dim_sem,
            vmem_limit_bytes=VMEM_LIMIT_BYTES,
        ),
    )(x)
    return jnp.sum(out[:, 0, 0])


def _as_2d_view(f: jax.Array) -> jax.Array:
    """Free (no data movement) 2-D view of a contiguous factor; lane-dense when possible."""
    n = f.size
    if n % LANE_W == 0:
        return f.reshape(n // LANE_W, LANE_W)
    if f.ndim >= 2:
        return f.reshape(-1, f.shape[-1])
    return f.reshape(1, n)


def _abs_sum_factor(f: jax.Array, num_cores: int = 1) -> jax.Array:
    """sum(|f|) in f32; Pallas kernel for large factors, plain jnp for tiny/odd ones."""
    n = f.size
    if n < MIN_KERNEL_ELEMS:
        return jnp.sum(jnp.abs(f.astype(jnp.float32)))
    x = _as_2d_view(f)
    rows, cols = x.shape
    itemsize = jnp.dtype(x.dtype).itemsize
    s = _packed_sublane(x.dtype)
    block_rows = min(MAX_BLOCK_ROWS, rows,
                     max(1, TARGET_BLOCK_BYTES // max(1, cols * itemsize)))
    block_rows = (block_rows // s) * s
    if block_rows < s:
        # Fewer than one packed tile of rows (or absurdly wide rows): not worth a launch.
        return jnp.sum(jnp.abs(f.astype(jnp.float32)))
    return _l1_abs_sum_2d(x, block_rows=block_rows, num_cores=num_cores)


@functools.partial(jax.jit, static_argnames=("num_cores",))
def _l1_forward(factors, weight, num_cores: int = 1):
    total = jnp.float32(0.0)
    for f in factors:                              # per-factor, in place, native dtype
        total = total + _abs_sum_factor(f, num_cores=num_cores)
    denom = jnp.float32(factors[0].shape[1])       # == factors[0][0].shape[0] in the PyTorch code
    return weight.astype(jnp.float32) * total / denom


def l1_regularizer(factors, weight: float, *, num_cores: int = 1) -> jax.Array:
    """JAX/Pallas equivalent of L1(weight).forward(factors)."""
    # TODO(synk): auto-detect v7x (2 TensorCores) via pltpu.get_tpu_info() and default
    # num_cores=2 there; kept at 1 so single-TC v5e/v6e never take the split path.
    return _l1_forward(list(factors), jnp.float32(weight), num_cores=num_cores)


def _reference(factors, weight: float) -> jax.Array:
    norm = jnp.float32(0.0)
    for factor in factors:
        norm = norm + jnp.float32(weight) * jnp.sum(jnp.abs(factor.astype(jnp.float32)))
    return norm / jnp.float32(factors[0].shape[1])


if __name__ == "__main__":
    key = jax.random.PRNGKey(0)
    k0, k1, k2, k3, k4 = jax.random.split(key, 5)

    weight = 0.01
    # Small factor tensors consistent with the module (a sequence of >=2-D factors).
    f0 = jax.random.normal(k0, (2, 8, 1024), dtype=jnp.float32)          # lane-dense kernel path
    f1 = jax.random.normal(k1, (3, 8, 1000), dtype=jnp.float32)          # ragged-width kernel path
    f2 = jax.random.normal(k2, (2, 16, 512), dtype=jnp.float32).astype(jnp.bfloat16)  # native bf16
    f3 = jax.random.normal(k3, (2, 8, 32), dtype=jnp.float32)            # tiny -> jnp fallback
    factors = [f0, f1, f2, f3]

    out = jax.block_until_ready(l1_regularizer(factors, weight))
    ref = jax.block_until_ready(_reference(factors, weight))
    assert jnp.allclose(out, ref, rtol=1e-4, atol=1e-4), (out, ref)

    # Exercise the multi-block reduction + boundary-row masking path on a tiny array
    # by forcing a small block size directly on the internal reducer.
    x = jax.random.normal(k4, (25, 256), dtype=jnp.float32)
    got = jax.block_until_ready(_l1_abs_sum_2d(x, block_rows=8))
    want = jnp.sum(jnp.abs(x))
    assert jnp.allclose(got, want, rtol=1e-5, atol=1e-4), (got, want)

    print("KERNEL_OK")
</pallas_src>

<mosaic_0001>
module attributes {stable_mosaic.version = 11 : i64} {
  func.func @_abs_sum_kernel(%arg0: i32, %arg1: i32, %arg2: memref<16x1024xf32, #tpu.memory_space<vmem>>, %arg3: memref<1x8x128xf32, #tpu.memory_space<vmem>>, %arg4: memref<8x1024xf32, #tpu.memory_space<vmem>>) attributes {dimension_semantics = [#tpu.dimension_semantics<arbitrary>, #tpu.dimension_semantics<arbitrary>], iteration_bounds = array<i64: 1, 1>, scalar_prefetch = 0 : i64, scratch_operands = 1 : i64, tpu.core_type = #tpu.core_type<tc>, window_params = [{transform_indices = @transform_0, window_bounds = array<i64: 16, 1024>}, {transform_indices = @transform_1, window_bounds = array<i64: 1, 8, 128>}]} {
    %c0_i32 = arith.constant 0 : i32
    %0 = arith.cmpi eq, %arg1, %c0_i32 : i32
    %1 = arith.extui %0 : i1 to i32
    %c0_i32_0 = arith.constant 0 : i32
    %2 = arith.cmpi ne, %1, %c0_i32_0 : i32
    scf.if %2 {
      %cst = arith.constant 0.000000e+00 : f32
      %10 = vector.broadcast %cst : f32 to vector<8x1024xf32>
      %c0_8 = arith.constant 0 : index
      %c0_9 = arith.constant 0 : index
      %11 = vector.load %arg4[%c0_8, %c0_9] : memref<8x1024xf32, #tpu.memory_space<vmem>>, vector<8x1024xf32>
      tpu.vector_store %arg4[%c0_8, %c0_9], %10 {strides = array<i32>} : memref<8x1024xf32, #tpu.memory_space<vmem>>, vector<8x1024xf32>,
    } else {
    }
    %c0 = arith.constant 0 : index
    %c0_1 = arith.constant 0 : index
    %3 = vector.load %arg4[%c0, %c0_1] : memref<8x1024xf32, #tpu.memory_space<vmem>>, vector<8x1024xf32>
    %c0_i32_2 = arith.constant 0 : i32
    %c2_i32 = arith.constant 2 : i32
    %4 = arith.addi %c0_i32_2, %c2_i32 : i32
    %c1_i32 = arith.constant 1 : i32
    %5 = scf.for %arg5 = %c0_i32_2 to %4 step %c1_i32 iter_args(%arg6 = %3) -> (vector<8x1024xf32>)  : i32 {
      %c8_i32 = arith.constant 8 : i32
      %10 = arith.muli %arg5, %c8_i32 : i32
      %11 = tpu.assume_multiple %10, 8 : i32
      %12 = arith.index_cast %11 : i32 to index
      %c0_8 = arith.constant 0 : index
      %13 = vector.load %arg2[%12, %c0_8] : memref<16x1024xf32, #tpu.memory_space<vmem>>, vector<8x1024xf32>
      %14 = math.absf %13 : vector<8x1024xf32>
      %15 = vector.shape_cast %14 : vector<8x1024xf32> to vector<1x8x1024xf32>
      %cst = arith.constant dense<0.000000e+00> : vector<8x1024xf32>
      %16 = vector.multi_reduction <add>, %15, %cst [0] : vector<1x8x1024xf32> to vector<8x1024xf32>
      %17 = arith.addf %arg6, %16 : vector<8x1024xf32>
      scf.yield %17 : vector<8x1024xf32>
    }
    %c2_i32_3 = arith.constant 2 : i32
    %c0_4 = arith.constant 0 : index
    %c0_5 = arith.constant 0 : index
    %6 = vector.load %arg4[%c0_4, %c0_5] : memref<8x1024xf32, #tpu.memory_space<vmem>>, vector<8x1024xf32>
    tpu.vector_store %arg4[%c0_4, %c0_5], %5 {strides = array<i32>} : memref<8x1024xf32, #tpu.memory_space<vmem>>, vector<8x1024xf32>,
    %c0_i32_6 = arith.constant 0 : i32
    %7 = arith.cmpi eq, %arg1, %c0_i32_6 : i32
    %8 = arith.extui %7 : i1 to i32
    %c0_i32_7 = arith.constant 0 : i32
    %9 = arith.cmpi ne, %8, %c0_i32_7 : i32
    scf.if %9 {
      %c0_8 = arith.constant 0 : index
      %c0_9 = arith.constant 0 : index
      %10 = vector.load %arg4[%c0_8, %c0_9] : memref<8x1024xf32, #tpu.memory_space<vmem>>, vector<8x1024xf32>
      %11 = vector.shape_cast %10 : vector<8x1024xf32> to vector<1x8x1024xf32>
      %cst = arith.constant dense<0.000000e+00> : vector<1xf32>
      %12 = vector.multi_reduction <add>, %11, %cst [1, 2] : vector<1x8x1024xf32> to vector<1xf32>
      %13 = vector.shape_cast %12 : vector<1xf32> to vector<1x1x1xf32>
      %14 = vector.extract %13[0, 0, 0] : f32 from vector<1x1x1xf32>
      %15 = vector.broadcast %14 : f32 to vector<1x8x128xf32>
      %c0_10 = arith.constant 0 : index
      %c0_11 = arith.constant 0 : index
      %c0_12 = arith.constant 0 : index
      %16 = vector.load %arg3[%c0_10, %c0_11, %c0_12] : memref<1x8x128xf32, #tpu.memory_space<vmem>>, vector<1x8x128xf32>
      tpu.vector_store %arg3[%c0_10, %c0_11, %c0_12], %15 {strides = array<i32>} : memref<1x8x128xf32, #tpu.memory_space<vmem>>, vector<1x8x128xf32>,
    } else {
    }
    return
  }
  func.func @transform_0(%arg0: i32, %arg1: i32) -> (i32, i32) {
    %c1_i32 = arith.constant 1 : i32
    %0 = arith.muli %arg0, %c1_i32 : i32
    %1 = arith.addi %0, %arg1 : i32
    %c0_i32 = arith.constant 0 : i32
    %c0_i32_0 = arith.constant 0 : i32
    return %1, %c0_i32 : i32, i32
  }
  func.func @transform_1(%arg0: i32, %arg1: i32) -> (i32, i32, i32) {
    %c0_i32 = arith.constant 0 : i32
    %c0_i32_0 = arith.constant 0 : i32
    %c0_i32_1 = arith.constant 0 : i32
    return %arg0, %c0_i32, %c0_i32_0 : i32, i32, i32
  }
}

module attributes {stable_mosaic.version = 11 : i64} {
  func.func @_abs_sum_kernel(%arg0: i32, %arg1: i32, %arg2: memref<16x1024xbf16, #tpu.memory_space<vmem>>, %arg3: memref<1x8x128xf32, #tpu.memory_space<vmem>>, %arg4: memref<8x1024xf32, #tpu.memory_space<vmem>>) attributes {dimension_semantics = [#tpu.dimension_semantics<arbitrary>, #tpu.dimension_semantics<arbitrary>], iteration_bounds = array<i64: 1, 1>, scalar_prefetch = 0 : i64, scratch_operands = 1 : i64, tpu.core_type = #tpu.core_type<tc>, window_params = [{transform_indices = @transform_0, window_bounds = array<i64: 16, 1024>}, {transform_indices = @transform_1, window_bounds = array<i64: 1, 8, 128>}]} {
    %c0_i32 = arith.constant 0 : i32
    %0 = arith.cmpi eq, %arg1, %c0_i32 : i32
    %1 = arith.extui %0 : i1 to i32
    %c0_i32_0 = arith.constant 0 : i32
    %2 = arith.cmpi ne, %1, %c0_i32_0 : i32
    scf.if %2 {
      %cst_8 = arith.constant 0.000000e+00 : f32
      %17 = vector.broadcast %cst_8 : f32 to vector<8x1024xf32>
      %c0_9 = arith.constant 0 : index
      %c0_10 = arith.constant 0 : index
      %18 = vector.load %arg4[%c0_9, %c0_10] : memref<8x1024xf32, #tpu.memory_space<vmem>>, vector<8x1024xf32>
      tpu.vector_store %arg4[%c0_9, %c0_10], %17 {strides = array<i32>} : memref<8x1024xf32, #tpu.memory_space<vmem>>, vector<8x1024xf32>,
    } else {
    }
    %c0 = arith.constant 0 : index
    %c0_1 = arith.constant 0 : index
    %3 = vector.load %arg4[%c0, %c0_1] : memref<8x1024xf32, #tpu.memory_space<vmem>>, vector<8x1024xf32>
    %c0_i32_2 = arith.constant 0 : i32
    %c16_i32 = arith.constant 16 : i32
    %4 = arith.muli %c0_i32_2, %c16_i32 : i32
    %5 = tpu.assume_multiple %4, 16 : i32
    %6 = arith.index_cast %5 : i32 to index
    %c0_3 = arith.constant 0 : index
    %7 = vector.load %arg2[%6, %c0_3] : memref<16x1024xbf16, #tpu.memory_space<vmem>>, vector<16x1024xbf16>
    %8 = math.absf %7 : vector<16x1024xbf16>
    %9 = arith.extf %8 : vector<16x1024xbf16> to vector<16x1024xf32>
    %10 = vector.shape_cast %9 : vector<16x1024xf32> to vector<2x8x1024xf32>
    %cst = arith.constant dense<0.000000e+00> : vector<8x1024xf32>
    %11 = vector.multi_reduction <add>, %10, %cst [0] : vector<2x8x1024xf32> to vector<8x1024xf32>
    %12 = arith.addf %3, %11 : vector<8x1024xf32>
    %c1_i32 = arith.constant 1 : i32
    %c0_4 = arith.constant 0 : index
    %c0_5 = arith.constant 0 : index
    %13 = vector.load %arg4[%c0_4, %c0_5] : memref<8x1024xf32, #tpu.memory_space<vmem>>, vector<8x1024xf32>
    tpu.vector_store %arg4[%c0_4, %c0_5], %12 {strides = array<i32>} : memref<8x1024xf32, #tpu.memory_space<vmem>>, vector<8x1024xf32>,
    %c0_i32_6 = arith.constant 0 : i32
    %14 = arith.cmpi eq, %arg1, %c0_i32_6 : i32
    %15 = arith.extui %14 : i1 to i32
    %c0_i32_7 = arith.constant 0 : i32
    %16 = arith.cmpi ne, %15, %c0_i32_7 : i32
    scf.if %16 {
      %c0_8 = arith.constant 0 : index
      %c0_9 = arith.constant 0 : index
      %17 = vector.load %arg4[%c0_8, %c0_9] : memref<8x1024xf32, #tpu.memory_space<vmem>>, vector<8x1024xf32>
      %18 = vector.shape_cast %17 : vector<8x1024xf32> to vector<1x8x1024xf32>
      %cst_10 = arith.constant dense<0.000000e+00> : vector<1xf32>
      %19 = vector.multi_reduction <add>, %18, %cst_10 [1, 2] : vector<1x8x1024xf32> to vector<1xf32>
      %20 = vector.shape_cast %19 : vector<1xf32> to vector<1x1x1xf32>
      %21 = vector.extract %20[0, 0, 0] : f32 from vector<1x1x1xf32>
      %22 = vector.broadcast %21 : f32 to vector<1x8x128xf32>
      %c0_11 = arith.constant 0 : index
      %c0_12 = arith.constant 0 : index
      %c0_13 = arith.constant 0 : index
      %23 = vector.load %arg3[%c0_11, %c0_12, %c0_13] : memref<1x8x128xf32, #tpu.memory_space<vmem>>, vector<1x8x128xf32>
      tpu.vector_store %arg3[%c0_11, %c0_12, %c0_13], %22 {strides = array<i32>} : memref<1x8x128xf32, #tpu.memory_space<vmem>>, vector<1x8x128xf32>,
    } else {
    }
    return
  }
  func.func @transform_0(%arg0: i32, %arg1: i32) -> (i32, i32) {
    %c1_i32 = arith.constant 1 : i32
    %0 = arith.muli %arg0, %c1_i32 : i32
    %1 = arith.addi %0, %arg1 : i32
    %c0_i32 = arith.constant 0 : i32
    %c0_i32_0 = arith.constant 0 : i32
    return %1, %c0_i32 : i32, i32
  }
  func.func @transform_1(%arg0: i32, %arg1: i32) -> (i32, i32, i32) {
    %c0_i32 = arith.constant 0 : i32
    %c0_i32_0 = arith.constant 0 : i32
    %c0_i32_1 = arith.constant 0 : i32
    return %arg0, %c0_i32, %c0_i32_0 : i32, i32, i32
  }
}

module attributes {stable_mosaic.version = 11 : i64} {
  func.func @_abs_sum_kernel(%arg0: i32, %arg1: i32, %arg2: memref<24x1000xf32, #tpu.memory_space<vmem>>, %arg3: memref<1x8x128xf32, #tpu.memory_space<vmem>>, %arg4: memref<8x1000xf32, #tpu.memory_space<vmem>>) attributes {dimension_semantics = [#tpu.dimension_semantics<arbitrary>, #tpu.dimension_semantics<arbitrary>], iteration_bounds = array<i64: 1, 1>, scalar_prefetch = 0 : i64, scratch_operands = 1 : i64, tpu.core_type = #tpu.core_type<tc>, window_params = [{transform_indices = @transform_0, window_bounds = array<i64: 24, 1000>}, {transform_indices = @transform_1, window_bounds = array<i64: 1, 8, 128>}]} {
    %c0_i32 = arith.constant 0 : i32
    %0 = arith.cmpi eq, %arg1, %c0_i32 : i32
    %1 = arith.extui %0 : i1 to i32
    %c0_i32_0 = arith.constant 0 : i32
    %2 = arith.cmpi ne, %1, %c0_i32_0 : i32
    scf.if %2 {
      %cst = arith.constant 0.000000e+00 : f32
      %10 = vector.broadcast %cst : f32 to vector<8x1000xf32>
      %c0_8 = arith.constant 0 : index
      %c0_9 = arith.constant 0 : index
      %11 = vector.load %arg4[%c0_8, %c0_9] : memref<8x1000xf32, #tpu.memory_space<vmem>>, vector<8x1000xf32>
      tpu.vector_store %arg4[%c0_8, %c0_9], %10 {strides = array<i32>} : memref<8x1000xf32, #tpu.memory_space<vmem>>, vector<8x1000xf32>,
    } else {
    }
    %c0 = arith.constant 0 : index
    %c0_1 = arith.constant 0 : index
    %3 = vector.load %arg4[%c0, %c0_1] : memref<8x1000xf32, #tpu.memory_space<vmem>>, vector<8x1000xf32>
    %c0_i32_2 = arith.constant 0 : i32
    %c3_i32 = arith.constant 3 : i32
    %4 = arith.addi %c0_i32_2, %c3_i32 : i32
    %c1_i32 = arith.constant 1 : i32
    %5 = scf.for %arg5 = %c0_i32_2 to %4 step %c1_i32 iter_args(%arg6 = %3) -> (vector<8x1000xf32>)  : i32 {
      %c8_i32 = arith.constant 8 : i32
      %10 = arith.muli %arg5, %c8_i32 : i32
      %11 = tpu.assume_multiple %10, 8 : i32
      %12 = arith.index_cast %11 : i32 to index
      %c0_8 = arith.constant 0 : index
      %13 = vector.load %arg2[%12, %c0_8] : memref<24x1000xf32, #tpu.memory_space<vmem>>, vector<8x1000xf32>
      %14 = math.absf %13 : vector<8x1000xf32>
      %15 = vector.shape_cast %14 : vector<8x1000xf32> to vector<1x8x1000xf32>
      %cst = arith.constant dense<0.000000e+00> : vector<8x1000xf32>
      %16 = vector.multi_reduction <add>, %15, %cst [0] : vector<1x8x1000xf32> to vector<8x1000xf32>
      %17 = arith.addf %arg6, %16 : vector<8x1000xf32>
      scf.yield %17 : vector<8x1000xf32>
    }
    %c3_i32_3 = arith.constant 3 : i32
    %c0_4 = arith.constant 0 : index
    %c0_5 = arith.constant 0 : index
    %6 = vector.load %arg4[%c0_4, %c0_5] : memref<8x1000xf32, #tpu.memory_space<vmem>>, vector<8x1000xf32>
    tpu.vector_store %arg4[%c0_4, %c0_5], %5 {strides = array<i32>} : memref<8x1000xf32, #tpu.memory_space<vmem>>, vector<8x1000xf32>,
    %c0_i32_6 = arith.constant 0 : i32
    %7 = arith.cmpi eq, %arg1, %c0_i32_6 : i32
    %8 = arith.extui %7 : i1 to i32
    %c0_i32_7 = arith.constant 0 : i32
    %9 = arith.cmpi ne, %8, %c0_i32_7 : i32
    scf.if %9 {
      %c0_8 = arith.constant 0 : index
      %c0_9 = arith.constant 0 : index
      %10 = vector.load %arg4[%c0_8, %c0_9] : memref<8x1000xf32, #tpu.memory_space<vmem>>, vector<8x1000xf32>
      %11 = vector.shape_cast %10 : vector<8x1000xf32> to vector<1x8x1000xf32>
      %cst = arith.constant dense<0.000000e+00> : vector<1xf32>
      %12 = vector.multi_reduction <add>, %11, %cst [1, 2] : vector<1x8x1000xf32> to vector<1xf32>
      %13 = vector.shape_cast %12 : vector<1xf32> to vector<1x1x1xf32>
      %14 = vector.extract %13[0, 0, 0] : f32 from vector<1x1x1xf32>
      %15 = vector.broadcast %14 : f32 to vector<1x8x128xf32>
      %c0_10 = arith.constant 0 : index
      %c0_11 = arith.constant 0 : index
      %c0_12 = arith.constant 0 : index
      %16 = vector.load %arg3[%c0_10, %c0_11, %c0_12] : memref<1x8x128xf32, #tpu.memory_space<vmem>>, vector<1x8x128xf32>
      tpu.vector_store %arg3[%c0_10, %c0_11, %c0_12], %15 {strides = array<i32>} : memref<1x8x128xf32, #tpu.memory_space<vmem>>, vector<1x8x128xf32>,
    } else {
    }
    return
  }
  func.func @transform_0(%arg0: i32, %arg1: i32) -> (i32, i32) {
    %c1_i32 = arith.constant 1 : i32
    %0 = arith.muli %arg0, %c1_i32 : i32
    %1 = arith.addi %0, %arg1 : i32
    %c0_i32 = arith.constant 0 : i32
    %c0_i32_0 = arith.constant 0 : i32
    return %1, %c0_i32 : i32, i32
  }
  func.func @transform_1(%arg0: i32, %arg1: i32) -> (i32, i32, i32) {
    %c0_i32 = arith.constant 0 : i32
    %c0_i32_0 = arith.constant 0 : i32
    %c0_i32_1 = arith.constant 0 : i32
    return %arg0, %c0_i32, %c0_i32_0 : i32, i32, i32
  }
}

</mosaic_0001>

<llo_original>
// kernel: _l1_forward.5
$region0: #{_l1_forward.5}
  #allocation0 [shape = 'u32[]', space=smem, size = 0x4, offset = 0x4, fixed_abs, tag = 'smem constant byte address 0x4 - core index']
  #allocation1 [shape = 'u32[72,128]{1,0:T(1,128)}', space=vmem, size = 0x9000, scoped, tag = 'internal scratch']
  #allocation2 [shape = 'f32[8,1024]{1,0:T(8,128)}', space=vmem, size = 0x8000, scoped, tag = 'scratch operand']
  %s0 = inlined_call_operand.vmem [shape: bf16[16,1024], index: 0, kind: input, shape index: {}]
  %s1 = inlined_call_operand.vmem [shape: f32[1,8,128], index: 1, kind: output, shape index: {}]
  %s2 = sld [smem:[#allocation0]]
  $region22: #{_l1_forward.5} parent=0
    _
  %s4 = ssub.s32 1, %s2
  %s5 = scalar_select 0, %s4, %s2
  // Predicated region
  $region2: #{_l1_forward.5} parent=0 // pred_check
    _
  $region3: #{_l1_forward.5} parent=0 // pred_check_branch
    %7 = sbr.rel (0) target = $region5
  $region4: #{_l1_forward.5} parent=0 // pred_region
    %s8 = sadd.s32 0, 0
    %s9 = smul.u32 2, %s8
    %p10 = scmp.lt.s32.totalorder %s9, 1
    %s11 = scalar_select %p10, %s9, 1
    %s12 = smul.addr %s11, 8
    %s13 = smul.addr %s12, 4
    %s14 = scalar_lea.vmem %s0, %s13
    %s15 = sadd.s32 0, 0
    %s16 = smul.u32 2, %s15
  $region5: #{_l1_forward.5} parent=0 // pred_fallthru
    _
  %s17 = sadd.s32 0, 0
  %s18 = smul.u32 2, %s17
  %p19 = scmp.lt.s32.totalorder %s18, 1
  %s20 = scalar_select %p19, %s18, 1
  %s21 = smul.addr %s20, 8
  %s22 = smul.addr %s21, 4
  %s23 = scalar_lea.vmem %s0, %s22
  %s24 = sadd.s32 0, 0
  %s25 = smul.u32 2, %s24
  %p26 = scmp.lt.s32.totalorder %s25, 1
  %s27 = scalar_select %p26, %s25, 1
  %s28 = smul.addr %s27, 8
  %s29 = smul.addr %s28, 4
  %s30 = scalar_lea.vmem %s0, %s29
  %s31 = sadd.s32 0, 0
  %s32 = smul.u32 2, %s31
  %p33 = scmp.eq.s32.totalorder 0, 0
  // Predicated region
  $region6: #{_l1_forward.5} parent=0 // pred_check
    %p34 = pneg %p33
  $region7: #{_l1_forward.5} parent=0 // pred_check_branch
    %36 = sbr.rel (%p34) target = $region9
  $region8: #{_l1_forward.5} parent=0 // pred_region
    %37 = vst [vmem:[#allocation2] sm:$0xff] 0.0
    %38 = vst [vmem:[#allocation2 + $0x8] sm:$0xff] 0.0
    %39 = vst [vmem:[#allocation2 + $0x10] sm:$0xff] 0.0
    %40 = vst [vmem:[#allocation2 + $0x18] sm:$0xff] 0.0
    %41 = vst [vmem:[#allocation2 + $0x20] sm:$0xff] 0.0
    %42 = vst [vmem:[#allocation2 + $0x28] sm:$0xff] 0.0
    %43 = vst [vmem:[#allocation2 + $0x30] sm:$0xff] 0.0
    %44 = vst [vmem:[#allocation2 + $0x38] sm:$0xff] 0.0
  $region9: #{_l1_forward.5} parent=0 // pred_fallthru
    _
  %v45 = vld [vmem:[#allocation2] sm:$0xff]
  %v46 = vld [vmem:[#allocation2 + $0x8] sm:$0xff]
  %v47 = vld [vmem:[#allocation2 + $0x10] sm:$0xff]
  %v48 = vld [vmem:[#allocation2 + $0x18] sm:$0xff]
  %v49 = vld [vmem:[#allocation2 + $0x20] sm:$0xff]
  %v50 = vld [vmem:[#allocation2 + $0x28] sm:$0xff]
  %v51 = vld [vmem:[#allocation2 + $0x30] sm:$0xff]
  %v52 = vld [vmem:[#allocation2 + $0x38] sm:$0xff]
  %s53 = smul.u32 0, 8
  %s54 = smul.addr %s53, 4
  %s55 = scalar_lea.vmem %s30, %s54
  %v56 = vld [vmem:[%s55] sm:$0xff]
  %v57 = vld [vmem:[%s55 + $0x8] sm:$0xff]
  %v58 = vld [vmem:[%s55 + $0x10] sm:$0xff]
  %v59 = vld [vmem:[%s55 + $0x18] sm:$0xff]
  %v60 = vld [vmem:[%s55 + $0x20] sm:$0xff]
  %v61 = vld [vmem:[%s55 + $0x28] sm:$0xff]
  %v62 = vld [vmem:[%s55 + $0x30] sm:$0xff]
  %v63 = vld [vmem:[%s55 + $0x38] sm:$0xff]
  %v64 = vand.u32 2147450879, %v56
  %v65 = vand.u32 2147450879, %v57
  %v66 = vand.u32 2147450879, %v58
  %v67 = vand.u32 2147450879, %v59
  %v68 = vand.u32 2147450879, %v60
  %v69 = vand.u32 2147450879, %v61
  %v70 = vand.u32 2147450879, %v62
  %v71 = vand.u32 2147450879, %v63
  %v72 = vunpack.c.l.bf16 %v64
  %v73 = vunpack.c.h.bf16 %v64
  %v74 = vunpack.c.l.bf16 %v65
  %v75 = vunpack.c.h.bf16 %v65
  %v76 = vunpack.c.l.bf16 %v66
  %v77 = vunpack.c.h.bf16 %v66
  %v78 = vunpack.c.l.bf16 %v67
  %v79 = vunpack.c.h.bf16 %v67
  %v80 = vunpack.c.l.bf16 %v68
  %v81 = vunpack.c.h.bf16 %v68
  %v82 = vunpack.c.l.bf16 %v69
  %v83 = vunpack.c.h.bf16 %v69
  %v84 = vunpack.c.l.bf16 %v70
  %v85 = vunpack.c.h.bf16 %v70
  %v86 = vunpack.c.l.bf16 %v71
  %v87 = vunpack.c.h.bf16 %v71
  %v88 = vadd.f32 %v72, %v80
  %v89 = vadd.f32 %v73, %v81
  %v90 = vadd.f32 %v74, %v82
  %v91 = vadd.f32 %v75, %v83
  %v92 = vadd.f32 %v76, %v84
  %v93 = vadd.f32 %v77, %v85
  %v94 = vadd.f32 %v78, %v86
  %v95 = vadd.f32 %v79, %v87
  %v96 = vadd.f32 %v45, %v88
  %v97 = vadd.f32 %v46, %v89
  %v98 = vadd.f32 %v47, %v90
  %v99 = vadd.f32 %v48, %v91
  %v100 = vadd.f32 %v49, %v92
  %v101 = vadd.f32 %v50, %v93
  %v102 = vadd.f32 %v51, %v94
  %v103 = vadd.f32 %v52, %v95
  %104 = vst [vmem:[#allocation2] sm:$0xff] %v96
  %105 = vst [vmem:[#allocation2 + $0x8] sm:$0xff] %v97
  %106 = vst [vmem:[#allocation2 + $0x10] sm:$0xff] %v98
  %107 = vst [vmem:[#allocation2 + $0x18] sm:$0xff] %v99
  %108 = vst [vmem:[#allocation2 + $0x20] sm:$0xff] %v100
  %109 = vst [vmem:[#allocation2 + $0x28] sm:$0xff] %v101
  %110 = vst [vmem:[#allocation2 + $0x30] sm:$0xff] %v102
  %111 = vst [vmem:[#allocation2 + $0x38] sm:$0xff] %v103
  // Predicated region
  $region10: #{_l1_forward.5} parent=0 // pred_check
    %p112 = pneg %p33
  $region11: #{_l1_forward.5} parent=0 // pred_check_branch
    %114 = sbr.rel (%p112) target = $region13
  $region12: #{_l1_forward.5} parent=0 // pred_region
    %v115 = vld [vmem:[#allocation2] sm:$0xff]
    %v116 = vld [vmem:[#allocation2 + $0x8] sm:$0xff]
    %v117 = vld [vmem:[#allocation2 + $0x10] sm:$0xff]
    %v118 = vld [vmem:[#allocation2 + $0x18] sm:$0xff]
    %v119 = vld [vmem:[#allocation2 + $0x20] sm:$0xff]
    %v120 = vld [vmem:[#allocation2 + $0x28] sm:$0xff]
    %v121 = vld [vmem:[#allocation2 + $0x30] sm:$0xff]
    %v122 = vld [vmem:[#allocation2 + $0x38] sm:$0xff]
    %v123 = vadd.f32 %v115, %v116
    %v124 = vadd.f32 %v123, %v117
    %v125 = vadd.f32 %v124, %v118
    %v126 = vadd.f32 %v125, %v119
    %v127 = vadd.f32 %v126, %v120
    %v128 = vadd.f32 %v127, %v121
    %v129 = vadd.f32 %v128, %v122
    %130 = vadd.xlane.f32.xlu0 %v129
    %v131 = vpop.xlane.xlu0 %130
    %v132 = vrot.slane %v131, 4
    %v133 = vadd.f32 %v131, %v132
    %v134 = vrot.slane %v133, 2
    %v135 = vadd.f32 %v133, %v134
    %v136 = vrot.slane %v135, 1
    %v137 = vadd.f32 %v135, %v136
    %s138 = vtos %v137
    %v139 = vstv %s138
    %140 = vst [vmem:[%s1] sm:$0xff] %v139
  $region13: #{_l1_forward.5} parent=0 // pred_fallthru
    _
  // Predicated region
  $region14: #{_l1_forward.5} parent=0 // pred_check
    _
  $region15: #{_l1_forward.5} parent=0 // pred_check_branch
    %142 = sbr.rel (0) target = $region17
  $region16: #{_l1_forward.5} parent=0 // pred_region
    _
  $region17: #{_l1_forward.5} parent=0 // pred_fallthru
    _
  // Predicated region
  $region18: #{_l1_forward.5} parent=0 // pred_check
    _
  $region19: #{_l1_forward.5} parent=0 // pred_check_branch
    %144 = sbr.rel (0) target = $region21
  $region20: #{_l1_forward.5} parent=0 // pred_region
    _
  $region21: #{_l1_forward.5} parent=0 // pred_fallthru
    _

// kernel: _l1_forward.3
$region0: #{_l1_forward.3}
  #allocation0 [shape = 'u32[]', space=smem, size = 0x4, offset = 0x4, fixed_abs, tag = 'smem constant byte address 0x4 - core index']
  #allocation1 [shape = 'u32[72,128]{1,0:T(1,128)}', space=vmem, size = 0x9000, scoped, tag = 'internal scratch']
  #allocation2 [shape = 'f32[8,1024]{1,0:T(8,128)}', space=vmem, size = 0x8000, scoped, tag = 'scratch operand']
  %s0 = inlined_call_operand.vmem [shape: f32[16,1024], index: 0, kind: input, shape index: {}]
  %s1 = inlined_call_operand.vmem [shape: f32[1,8,128], index: 1, kind: output, shape index: {}]
  %s2 = sld [smem:[#allocation0]]
  $region29: #{_l1_forward.3} parent=0
    _
  %s4 = ssub.s32 1, %s2
  %s5 = scalar_select 0, %s4, %s2
  // Predicated region
  $region2: #{_l1_forward.3} parent=0 // pred_check
    _
  $region3: #{_l1_forward.3} parent=0 // pred_check_branch
    %7 = sbr.rel (0) target = $region5
  $region4: #{_l1_forward.3} parent=0 // pred_region
    %s8 = sadd.s32 0, 0
    %s9 = smul.u32 2, %s8
    %p10 = scmp.lt.s32.totalorder %s9, 1
    %s11 = scalar_select %p10, %s9, 1
    %s12 = smul.addr %s11, 8
    %s13 = smul.addr %s12, 8
    %s14 = scalar_lea.vmem %s0, %s13
    %s15 = sadd.s32 0, 0
    %s16 = smul.u32 2, %s15
  $region5: #{_l1_forward.3} parent=0 // pred_fallthru
    _
  %s17 = sadd.s32 0, 0
  %s18 = smul.u32 2, %s17
  %p19 = scmp.lt.s32.totalorder %s18, 1
  %s20 = scalar_select %p19, %s18, 1
  %s21 = smul.addr %s20, 8
  %s22 = smul.addr %s21, 8
  %s23 = scalar_lea.vmem %s0, %s22
  %s24 = sadd.s32 0, 0
  %s25 = smul.u32 2, %s24
  %p26 = scmp.lt.s32.totalorder %s25, 1
  %s27 = scalar_select %p26, %s25, 1
  %s28 = smul.addr %s27, 8
  %s29 = smul.addr %s28, 8
  %s30 = scalar_lea.vmem %s0, %s29
  %s31 = sadd.s32 0, 0
  %s32 = smul.u32 2, %s31
  %p33 = scmp.eq.s32.totalorder 0, 0
  // Predicated region
  $region6: #{_l1_forward.3} parent=0 // pred_check
    %p34 = pneg %p33
  $region7: #{_l1_forward.3} parent=0 // pred_check_branch
    %36 = sbr.rel (%p34) target = $region9
  $region8: #{_l1_forward.3} parent=0 // pred_region
    %37 = vst [vmem:[#allocation2] sm:$0xff] 0.0
    %38 = vst [vmem:[#allocation2 + $0x8] sm:$0xff] 0.0
    %39 = vst [vmem:[#allocation2 + $0x10] sm:$0xff] 0.0
    %40 = vst [vmem:[#allocation2 + $0x18] sm:$0xff] 0.0
    %41 = vst [vmem:[#allocation2 + $0x20] sm:$0xff] 0.0
    %42 = vst [vmem:[#allocation2 + $0x28] sm:$0xff] 0.0
    %43 = vst [vmem:[#allocation2 + $0x30] sm:$0xff] 0.0
    %44 = vst [vmem:[#allocation2 + $0x38] sm:$0xff] 0.0
  $region9: #{_l1_forward.3} parent=0 // pred_fallthru
    _
  %v45 = vld [vmem:[#allocation2] sm:$0xff]
  %v46 = vld [vmem:[#allocation2 + $0x8] sm:$0xff]
  %v47 = vld [vmem:[#allocation2 + $0x10] sm:$0xff]
  %v48 = vld [vmem:[#allocation2 + $0x18] sm:$0xff]
  %v49 = vld [vmem:[#allocation2 + $0x20] sm:$0xff]
  %v50 = vld [vmem:[#allocation2 + $0x28] sm:$0xff]
  %v51 = vld [vmem:[#allocation2 + $0x30] sm:$0xff]
  %v52 = vld [vmem:[#allocation2 + $0x38] sm:$0xff]
  loop: start=0, step=1, limit=2
  $region10: #{_l1_forward.3} parent=0 // loop_pre_header
    _
  $region11: #{_l1_forward.3} parent=0 // loop_header
    %s54 = sphi 0, %s58
    %p55 = scmp.ge.s32.totalorder %s54, 2
    %v59 = vphi %v45, %v97
    %v60 = vphi %v46, %v98
    %v61 = vphi %v47, %v99
    %v62 = vphi %v48, %v100
    %v63 = vphi %v49, %v101
    %v64 = vphi %v50, %v102
    %v65 = vphi %v51, %v103
    %v66 = vphi %v52, %v104
  $region12: #{_l1_forward.3} parent=0 // loop_header_branch
    %57 = sbr.rel (%p55) target = $region16
  $region13: #{_l1_forward.3} parent=0 // loop_body
    %s67 = smul.u32 %s54, 8
    %s68 = sshra.s32 %s67, 3
    %s69 = sand.u32 %s67, 7
    %s70 = smul.u32 %s68, 8
    %s71 = smul.addr %s70, 8
    %s72 = scalar_lea.vmem %s30, %s71
    %v73 = vld [vmem:[%s72] sm:$0xff]
    %v74 = vld [vmem:[%s72 + $0x8] sm:$0xff]
    %v75 = vld [vmem:[%s72 + $0x10] sm:$0xff]
    %v76 = vld [vmem:[%s72 + $0x18] sm:$0xff]
    %v77 = vld [vmem:[%s72 + $0x20] sm:$0xff]
    %v78 = vld [vmem:[%s72 + $0x28] sm:$0xff]
    %v79 = vld [vmem:[%s72 + $0x30] sm:$0xff]
    %v80 = vld [vmem:[%s72 + $0x38] sm:$0xff]
    %v81 = vand.u32 2147483647, %v73
    %v82 = vand.u32 2147483647, %v74
    %v83 = vand.u32 2147483647, %v75
    %v84 = vand.u32 2147483647, %v76
    %v85 = vand.u32 2147483647, %v77
    %v86 = vand.u32 2147483647, %v78
    %v87 = vand.u32 2147483647, %v79
    %v88 = vand.u32 2147483647, %v80
    %v89 = vadd.f32 %v81, 0.0
    %v90 = vadd.f32 %v82, 0.0
    %v91 = vadd.f32 %v83, 0.0
    %v92 = vadd.f32 %v84, 0.0
    %v93 = vadd.f32 %v85, 0.0
    %v94 = vadd.f32 %v86, 0.0
    %v95 = vadd.f32 %v87, 0.0
    %v96 = vadd.f32 %v88, 0.0
    %v97 = vadd.f32 %v59, %v89
    %v98 = vadd.f32 %v60, %v90
    %v99 = vadd.f32 %v61, %v91
    %v100 = vadd.f32 %v62, %v92
    %v101 = vadd.f32 %v63, %v93
    %v102 = vadd.f32 %v64, %v94
    %v103 = vadd.f32 %v65, %v95
    %v104 = vadd.f32 %v66, %v96
  $region14: #{_l1_forward.3} parent=0 // loop_footer
    %s58 = sadd.s32 1, %s54
  $region15: #{_l1_forward.3} parent=0 // loop_footer_branch
    %53 = sbr.rel target = $region11
  $region16: #{_l1_forward.3} parent=0 // loop_exit
    _
  %105 = vst [vmem:[#allocation2] sm:$0xff] %v59
  %106 = vst [vmem:[#allocation2 + $0x8] sm:$0xff] %v60
  %107 = vst [vmem:[#allocation2 + $0x10] sm:$0xff] %v61
  %108 = vst [vmem:[#allocation2 + $0x18] sm:$0xff] %v62
  %109 = vst [vmem:[#allocation2 + $0x20] sm:$0xff] %v63
  %110 = vst [vmem:[#allocation2 + $0x28] sm:$0xff] %v64
  %111 = vst [vmem:[#allocation2 + $0x30] sm:$0xff] %v65
  %112 = vst [vmem:[#allocation2 + $0x38] sm:$0xff] %v66
  // Predicated region
  $region17: #{_l1_forward.3} parent=0 // pred_check
    %p113 = pneg %p33
  $region18: #{_l1_forward.3} parent=0 // pred_check_branch
    %115 = sbr.rel (%p113) target = $region20
  $region19: #{_l1_forward.3} parent=0 // pred_region
    %v116 = vld [vmem:[#allocation2] sm:$0xff]
    %v117 = vld [vmem:[#allocation2 + $0x8] sm:$0xff]
    %v118 = vld [vmem:[#allocation2 + $0x10] sm:$0xff]
    %v119 = vld [vmem:[#allocation2 + $0x18] sm:$0xff]
    %v120 = vld [vmem:[#allocation2 + $0x20] sm:$0xff]
    %v121 = vld [vmem:[#allocation2 + $0x28] sm:$0xff]
    %v122 = vld [vmem:[#allocation2 + $0x30] sm:$0xff]
    %v123 = vld [vmem:[#allocation2 + $0x38] sm:$0xff]
    %v124 = vadd.f32 %v116, %v117
    %v125 = vadd.f32 %v124, %v118
    %v126 = vadd.f32 %v125, %v119
    %v127 = vadd.f32 %v126, %v120
    %v128 = vadd.f32 %v127, %v121
    %v129 = vadd.f32 %v128, %v122
    %v130 = vadd.f32 %v129, %v123
    %131 = vadd.xlane.f32.xlu0 %v130
    %v132 = vpop.xlane.xlu0 %131
    %v133 = vrot.slane %v132, 4
    %v134 = vadd.f32 %v132, %v133
    %v135 = vrot.slane %v134, 2
    %v136 = vadd.f32 %v134, %v135
    %v137 = vrot.slane %v136, 1
    %v138 = vadd.f32 %v136, %v137
    %s139 = vtos %v138
    %v140 = vstv %s139
    %141 = vst [vmem:[%s1] sm:$0xff] %v140
  $region20: #{_l1_forward.3} parent=0 // pred_fallthru
    _
  // Predicated region
  $region21: #{_l1_forward.3} parent=0 // pred_check
    _
  $region22: #{_l1_forward.3} parent=0 // pred_check_branch
    %143 = sbr.rel (0) target = $region24
  $region23: #{_l1_forward.3} parent=0 // pred_region
    _
  $region24: #{_l1_forward.3} parent=0 // pred_fallthru
    _
  // Predicated region
  $region25: #{_l1_forward.3} parent=0 // pred_check
    _
  $region26: #{_l1_forward.3} parent=0 // pred_check_branch
    %145 = sbr.rel (0) target = $region28
  $region27: #{_l1_forward.3} parent=0 // pred_region
    _
  $region28: #{_l1_forward.3} parent=0 // pred_fallthru
    _

// kernel: _l1_forward.4
$region0: #{_l1_forward.4}
  #allocation0 [shape = 'u32[]', space=smem, size = 0x4, offset = 0x4, fixed_abs, tag = 'smem constant byte address 0x4 - core index']
  #allocation1 [shape = 'u32[72,128]{1,0:T(1,128)}', space=vmem, size = 0x9000, scoped, tag = 'internal scratch']
  #allocation2 [shape = 'f32[8,1000]{1,0:T(8,128)}', space=vmem, size = 0x8000, scoped, tag = 'scratch operand']
  %s0 = inlined_call_operand.hbm [shape: f32[24,1000], index: 0, kind: input, shape index: {}]
  %s1 = inlined_call_operand.vmem [shape: f32[1,8,128], index: 1, kind: output, shape index: {}]
  %s2 = sld [smem:[#allocation0]]
  $region33: #{_l1_forward.4} parent=0
    _
  %s4 = ssub.s32 1, %s2
  %s5 = scalar_select 0, %s4, %s2
  $region1: #{_l1_forward.4} parent=0
    #allocation3 [shape = 'u8[98304]{0}', space=vmem, size = 0x18000, scoped, tag = 'input window, operand 0, single buffered']
    #allocation4 [shape = 's32[1]{0}', space=sflag, size = 0x4, scoped, tag = 'scoped memory for _l1_forward.4']
    %6 = vsyncpa [#allocation4], 0
    // Predicated region
    $region2: #{_l1_forward.4} parent=1 // pred_check
      _
    $region3: #{_l1_forward.4} parent=1 // pred_check_branch
      %8 = sbr.rel (0) target = $region5
    $region4: #{_l1_forward.4} parent=1 // pred_region
      %s9 = sadd.s32 0, 0
      %s10 = smul.u32 3, %s9
      %12 = vsyncadd [#allocation4], 0
      %s13 = smul.addr %s10, 8
      %s14 = smul.addr %s13, 8
      %s15 = scalar_lea.hbm %s0, %s14
      %s16 = sshll.u32 %s15, 4
      %s17 = int_to_ptr.hbm [resolvable:$true] %s16
      %s18 = sshll.u32 [#allocation3], 4
      %s19 = int_to_ptr.vmem [resolvable:$true] %s18
      %24 = dma.hbm_to_vmem [thread:$0]  %s17, 3072, %s19, [#allocation4], 1024, 1024, 64
    $region5: #{_l1_forward.4} parent=1 // pred_fallthru
      _
    // Predicated region
    $region6: #{_l1_forward.4} parent=1 // pred_check
      _
    $region7: #{_l1_forward.4} parent=1 // pred_check_branch
      %26 = sbr.rel (0) target = $region9
    $region8: #{_l1_forward.4} parent=1 // pred_region
      %28 = dma.done [#allocation4], 3072
    $region9: #{_l1_forward.4} parent=1 // pred_fallthru
      _
    %s29 = sadd.s32 0, 0
    %s30 = smul.u32 3, %s29
    %p31 = scmp.eq.s32.totalorder 0, 0
    // Predicated region
    $region10: #{_l1_forward.4} parent=1 // pred_check
      %p32 = pneg %p31
    $region11: #{_l1_forward.4} parent=1 // pred_check_branch
      %34 = sbr.rel (%p32) target = $region13
    $region12: #{_l1_forward.4} parent=1 // pred_region
      %35 = vst [vmem:[#allocation2] sm:$0xff] 0.0
      %36 = vst [vmem:[#allocation2 + $0x8] sm:$0xff] 0.0
      %37 = vst [vmem:[#allocation2 + $0x10] sm:$0xff] 0.0
      %38 = vst [vmem:[#allocation2 + $0x18] sm:$0xff] 0.0
      %39 = vst [vmem:[#allocation2 + $0x20] sm:$0xff] 0.0
      %40 = vst [vmem:[#allocation2 + $0x28] sm:$0xff] 0.0
      %41 = vst [vmem:[#allocation2 + $0x30] sm:$0xff] 0.0
      %vm42 = vcmask 850944
      %43 = vst.msk [vmem:[#allocation2 + $0x38] sm:$0xff] %vm42, 0.0
    $region13: #{_l1_forward.4} parent=1 // pred_fallthru
      _
    %v44 = vld [vmem:[#allocation2] sm:$0xff]
    %v45 = vld [vmem:[#allocation2 + $0x8] sm:$0xff]
    %v46 = vld [vmem:[#allocation2 + $0x10] sm:$0xff]
    %v47 = vld [vmem:[#allocation2 + $0x18] sm:$0xff]
    %v48 = vld [vmem:[#allocation2 + $0x20] sm:$0xff]
    %v49 = vld [vmem:[#allocation2 + $0x28] sm:$0xff]
    %v50 = vld [vmem:[#allocation2 + $0x30] sm:$0xff]
    %v51 = vld [vmem:[#allocation2 + $0x38] sm:$0xff]
    loop: start=0, step=1, limit=3
    $region14: #{_l1_forward.4} parent=1 // loop_pre_header
      _
    $region15: #{_l1_forward.4} parent=1 // loop_header
      %s53 = sphi 0, %s57
      %p54 = scmp.ge.s32.totalorder %s53, 3
      %v58 = vphi %v44, %v96
      %v59 = vphi %v45, %v97
      %v60 = vphi %v46, %v98
      %v61 = vphi %v47, %v99
      %v62 = vphi %v48, %v100
      %v63 = vphi %v49, %v101
      %v64 = vphi %v50, %v102
      %v65 = vphi %v51, %v103
    $region16: #{_l1_forward.4} parent=1 // loop_header_branch
      %56 = sbr.rel (%p54) target = $region20
    $region17: #{_l1_forward.4} parent=1 // loop_body
      %s66 = smul.u32 %s53, 8
      %s67 = sshra.s32 %s66, 3
      %s68 = sand.u32 %s66, 7
      %s69 = smul.u32 %s67, 8
      %s70 = smul.addr %s69, 8
      %s71 = scalar_lea.vmem [#allocation3], %s70
      %v72 = vld [vmem:[%s71] sm:$0xff]
      %v73 = vld [vmem:[%s71 + $0x8] sm:$0xff]
      %v74 = vld [vmem:[%s71 + $0x10] sm:$0xff]
      %v75 = vld [vmem:[%s71 + $0x18] sm:$0xff]
      %v76 = vld [vmem:[%s71 + $0x20] sm:$0xff]
      %v77 = vld [vmem:[%s71 + $0x28] sm:$0xff]
      %v78 = vld [vmem:[%s71 + $0x30] sm:$0xff]
      %v79 = vld [vmem:[%s71 + $0x38] sm:$0xff]
      %v80 = vand.u32 2147483647, %v72
      %v81 = vand.u32 2147483647, %v73
      %v82 = vand.u32 2147483647, %v74
      %v83 = vand.u32 2147483647, %v75
      %v84 = vand.u32 2147483647, %v76
      %v85 = vand.u32 2147483647, %v77
      %v86 = vand.u32 2147483647, %v78
      %v87 = vand.u32 2147483647, %v79
      %v88 = vadd.f32 %v80, 0.0
      %v89 = vadd.f32 %v81, 0.0
      %v90 = vadd.f32 %v82, 0.0
      %v91 = vadd.f32 %v83, 0.0
      %v92 = vadd.f32 %v84, 0.0
      %v93 = vadd.f32 %v85, 0.0
      %v94 = vadd.f32 %v86, 0.0
      %v95 = vadd.f32 %v87, 0.0
      %v96 = vadd.f32 %v58, %v88
      %v97 = vadd.f32 %v59, %v89
      %v98 = vadd.f32 %v60, %v90
      %v99 = vadd.f32 %v61, %v91
      %v100 = vadd.f32 %v62, %v92
      %v101 = vadd.f32 %v63, %v93
      %v102 = vadd.f32 %v64, %v94
      %v103 = vadd.f32 %v65, %v95
    $region18: #{_l1_forward.4} parent=1 // loop_footer
      %s57 = sadd.s32 1, %s53
    $region19: #{_l1_forward.4} parent=1 // loop_footer_branch
      %52 = sbr.rel target = $region15
    $region20: #{_l1_forward.4} parent=1 // loop_exit
      _
    %104 = vst [vmem:[#allocation2] sm:$0xff] %v58
    %105 = vst [vmem:[#allocation2 + $0x8] sm:$0xff] %v59
    %106 = vst [vmem:[#allocation2 + $0x10] sm:$0xff] %v60
    %107 = vst [vmem:[#allocation2 + $0x18] sm:$0xff] %v61
    %108 = vst [vmem:[#allocation2 + $0x20] sm:$0xff] %v62
    %109 = vst [vmem:[#allocation2 + $0x28] sm:$0xff] %v63
    %110 = vst [vmem:[#allocation2 + $0x30] sm:$0xff] %v64
    %vm111 = vcmask 850944
    %112 = vst.msk [vmem:[#allocation2 + $0x38] sm:$0xff] %vm111, %v65
    // Predicated region
    $region21: #{_l1_forward.4} parent=1 // pred_check
      %p113 = pneg %p31
    $region22: #{_l1_forward.4} parent=1 // pred_check_branch
      %115 = sbr.rel (%p113) target = $region24
    $region23: #{_l1_forward.4} parent=1 // pred_region
      %v116 = vld [vmem:[#allocation2] sm:$0xff]
      %v117 = vld [vmem:[#allocation2 + $0x8] sm:$0xff]
      %v118 = vld [vmem:[#allocation2 + $0x10] sm:$0xff]
      %v119 = vld [vmem:[#allocation2 + $0x18] sm:$0xff]
      %v120 = vld [vmem:[#allocation2 + $0x20] sm:$0xff]
      %v121 = vld [vmem:[#allocation2 + $0x28] sm:$0xff]
      %v122 = vld [vmem:[#allocation2 + $0x30] sm:$0xff]
      %v123 = vld [vmem:[#allocation2 + $0x38] sm:$0xff]
      %v124 = vadd.f32 %v116, %v117
      %v125 = vadd.f32 %v124, %v118
      %v126 = vadd.f32 %v125, %v119
      %v127 = vadd.f32 %v126, %v120
      %v128 = vadd.f32 %v127, %v121
      %v129 = vadd.f32 %v128, %v122
      %v130 = vsel %vm111, %v123, 0.0
      %v131 = vadd.f32 %v129, %v130
      %132 = vadd.xlane.f32.xlu0 %v131
      %v133 = vpop.xlane.xlu0 %132
      %v134 = vrot.slane %v133, 4
      %v135 = vadd.f32 %v133, %v134
      %v136 = vrot.slane %v135, 2
      %v137 = vadd.f32 %v135, %v136
      %v138 = vrot.slane %v137, 1
      %v139 = vadd.f32 %v137, %v138
      %s140 = vtos %v139
      %v141 = vstv %s140
      %142 = vst [vmem:[%s1] sm:$0xff] %v141
    $region24: #{_l1_forward.4} parent=1 // pred_fallthru
      _
    // Predicated region
    $region25: #{_l1_forward.4} parent=1 // pred_check
      _
    $region26: #{_l1_forward.4} parent=1 // pred_check_branch
      %144 = sbr.rel (0) target = $region28
    $region27: #{_l1_forward.4} parent=1 // pred_region
      _
    $region28: #{_l1_forward.4} parent=1 // pred_fallthru
      _
    // Predicated region
    $region29: #{_l1_forward.4} parent=1 // pred_check
      _
    $region30: #{_l1_forward.4} parent=1 // pred_check_branch
      %146 = sbr.rel (0) target = $region32
    $region31: #{_l1_forward.4} parent=1 // pred_region
      _
    $region32: #{_l1_forward.4} parent=1 // pred_fallthru
      _
    %147 = vsyncpa [#allocation4], 1

</llo_original>
